<compile_context>
chip_gen: v7x
topology: tpu7x:2x2x1
jax: 0.10.0
libtpu: 0.0.40
codegen_flags: <defaults>
</compile_context>

<pallas_src>
import jax
import jax.numpy as jnp
from jax.experimental import pallas as pl
from jax.experimental.pallas import tpu as pltpu


def _hyper_fused_kernel(z_ref, w_ref, b_ref, out_ref):
    """out = (z @ w_cat) + b_cat  with f32 accumulation.

    z_ref:   (rows, K)      activations (any float dtype; cast to weight dtype)
    w_ref:   (K, N1+N2)     packed [w3 | b_hyper2], typically bf16
    b_ref:   (1, N1+N2)     f32 [b3 | zeros] -- sublane-broadcast VPU add
    out_ref: (rows, N1+N2)  f32 output slab (single unmasked vst stream)
    """
    z = z_ref[...]
    w = w_ref[...]
    if z.dtype != w.dtype:
        z = z.astype(w.dtype)          # native bf16 MXU path when weights are bf16
    acc = jnp.dot(z, w, preferred_element_type=jnp.float32)
    out_ref[...] = (acc + b_ref[...]).astype(out_ref.dtype)


def hyper_forward_packed(z, w_cat, b_cat, *, row_block=None):
    """z: (B, K), w_cat: (K, N), b_cat: (1, N) -> (B, N) f32.

    row_block=None (or >= B): grid-less, whole problem resident in VMEM.
    row_block=r:              1-D parallel grid over batch rows (v7x uses both TCs).
    """
    B, K = z.shape
    Kw, N = w_cat.shape
    assert K == Kw and b_cat.shape == (1, N)

    out_dtype = jnp.float32
    zi = jnp.dtype(z.dtype).itemsize
    wi = jnp.dtype(w_cat.dtype).itemsize

    flops = 2 * B * K * N
    bytes_accessed = B * K * zi + K * N * wi + N * 4 + B * N * 4
    cost = pl.CostEstimate(flops=flops, transcendentals=0,
                           bytes_accessed=bytes_accessed)

    vmem = pl.BlockSpec(memory_space=pltpu.MemorySpace.VMEM)
    VMEM_BUDGET = 32 * 1024 * 1024  # conservative: v7x scoped default (64 MiB physical)

    if row_block is None or row_block >= B:
        total_bytes = B * K * zi + K * N * wi + N * 4 + B * N * 4
        assert total_bytes < VMEM_BUDGET, "working set too large for fused VMEM kernel"
        return pl.pallas_call(
            _hyper_fused_kernel,
            out_shape=jax.ShapeDtypeStruct((B, N), out_dtype),
            in_specs=[vmem, vmem, vmem],
            out_specs=vmem,
            cost_estimate=cost,
        )(z, w_cat, b_cat)

    # Batched path: tile rows of z; weight + bias blocks are reused every step.
    assert B % row_block == 0, "row_block must divide the batch"
    # Double-buffered per-step VMEM footprint (z tile, weight, bias, out tile).
    per_step = 2 * (row_block * K * zi + K * N * wi + N * 4 + row_block * N * 4)
    assert per_step < VMEM_BUDGET, "row_block too large for VMEM budget"
    grid = (B // row_block,)
    return pl.pallas_call(
        _hyper_fused_kernel,
        out_shape=jax.ShapeDtypeStruct((B, N), out_dtype),
        grid=grid,
        in_specs=[
            pl.BlockSpec((row_block, K), lambda i: (i, 0)),
            pl.BlockSpec((K, N), lambda i: (0, 0)),
            pl.BlockSpec((1, N), lambda i: (0, 0)),
        ],
        out_specs=pl.BlockSpec((row_block, N), lambda i: (i, 0)),
        cost_estimate=cost,
        compiler_params=pltpu.CompilerParams(
            dimension_semantics=("parallel",)),  # shard rows across v7x's 2 TCs
    )(z, w_cat, b_cat)


class HyperNetworkPallas:
    """oneM+bias HyperNetwork with deterministic synthetic parameters."""

    def __init__(self, z_dim=128, label_size=128, zoom_dim=8, hidden=96,
                 param_dtype=jnp.bfloat16, seed=0):
        self.z_dim = z_dim
        self.label_size = label_size
        self.zoom_dim = zoom_dim
        self.hidden = hidden  # unused for 'oneM+bias' (parity with torch module)
        self.n1 = zoom_dim * label_size
        self.n2 = label_size

        key = jax.random.PRNGKey(seed)
        k_w3, k_b3, k_bh2 = jax.random.split(key, 3)
        # Same shapes as the torch Parameters (torch.randn -> jax.random.normal).
        self.w3 = jax.random.normal(k_w3, (z_dim, self.n1), jnp.float32)
        self.b3 = jax.random.normal(k_b3, (self.n1,), jnp.float32)
        self.b_hyper2 = jax.random.normal(k_bh2, (z_dim, self.n2), jnp.float32)

        # Packed parameters consumed by the fused kernel (built once at init):
        #   w_cat = [w3 | b_hyper2]        (K, N1+N2), stored bf16 (halved DMA)
        #   b_cat = [b3 | 0]               (1, N1+N2), f32 (exact add)
        self.w_cat = jnp.concatenate([self.w3, self.b_hyper2], axis=1).astype(param_dtype)
        self.b_cat = jnp.concatenate(
            [self.b3, jnp.zeros((self.n2,), jnp.float32)]).reshape(1, self.n1 + self.n2)

    def __call__(self, z, *, row_block=None):
        out = hyper_forward_packed(z, self.w_cat, self.b_cat, row_block=row_block)
        h_final = out[:, :self.n1]
        bias = out[:, self.n1:]
        # Contiguous (B, N1) -> (B, zoom, label) reshape stays outside the kernel
        # (metadata-only in XLA; in-kernel it could force a VMEM relayout).
        kernel = h_final.reshape(-1, self.zoom_dim, self.label_size)
        return kernel, bias


def _reference(net, z):
    """Pure-JAX reference using the exact parameters the kernel sees."""
    w = net.w_cat.astype(jnp.float32)
    zf = z.astype(net.w_cat.dtype).astype(jnp.float32)
    full = zf @ w + net.b_cat
    ref_kernel = full[:, :net.n1].reshape(-1, net.zoom_dim, net.label_size)
    ref_bias = full[:, net.n1:]
    return ref_kernel, ref_bias


if __name__ == "__main__":
    # Small shapes consistent with the module's forward:
    # z: (batch, z_dim) with batch=8, z_dim=128, zoom_dim=8, label_size=128.
    B, Z_DIM, ZOOM, LABEL = 8, 128, 8, 128

    net = HyperNetworkPallas(z_dim=Z_DIM, label_size=LABEL, zoom_dim=ZOOM, seed=0)

    key_in = jax.random.PRNGKey(0)
    z = jax.random.normal(key_in, (B, Z_DIM), jnp.float32)

    # --- tiny-batch, grid-less path ---
    kernel_out, bias_out = net(z)
    kernel_out = jax.block_until_ready(kernel_out)
    bias_out = jax.block_until_ready(bias_out)

    ref_kernel, ref_bias = _reference(net, z)
    assert kernel_out.shape == (B, ZOOM, LABEL)
    assert bias_out.shape == (B, LABEL)
    assert jnp.allclose(kernel_out, ref_kernel, atol=1e-2, rtol=1e-2)
    assert jnp.allclose(bias_out, ref_bias, atol=1e-2, rtol=1e-2)

    # --- batched path: amortizes the weight DMA and (on v7x) uses both TCs ---
    B2 = 256
    z_big = jax.random.normal(jax.random.PRNGKey(1), (B2, Z_DIM), jnp.float32)
    kernel_big, bias_big = net(z_big, row_block=128)
    kernel_big = jax.block_until_ready(kernel_big)
    bias_big = jax.block_until_ready(bias_big)

    ref_kernel_big, ref_bias_big = _reference(net, z_big)
    assert kernel_big.shape == (B2, ZOOM, LABEL)
    assert bias_big.shape == (B2, LABEL)
    assert jnp.allclose(kernel_big, ref_kernel_big, atol=1e-2, rtol=1e-2)
    assert jnp.allclose(bias_big, ref_bias_big, atol=1e-2, rtol=1e-2)

    print("KERNEL_OK")
</pallas_src>

<mosaic_0001>
module attributes {stable_mosaic.version = 11 : i64} {
  func.func @_hyper_fused_kernel(%arg0: memref<8x128xf32, #tpu.memory_space<vmem>>, %arg1: memref<128x1152xbf16, #tpu.memory_space<vmem>>, %arg2: memref<1x1152xf32, #tpu.memory_space<vmem>>, %arg3: memref<8x1152xf32, #tpu.memory_space<vmem>>) attributes {dimension_semantics = [], scalar_prefetch = 0 : i64, scratch_operands = 0 : i64, tpu.core_type = #tpu.core_type<tc>} {
    %c0 = arith.constant 0 : index
    %c0_0 = arith.constant 0 : index
    %0 = vector.load %arg0[%c0, %c0_0] : memref<8x128xf32, #tpu.memory_space<vmem>>, vector<8x128xf32>
    %c0_1 = arith.constant 0 : index
    %c0_2 = arith.constant 0 : index
    %1 = vector.load %arg1[%c0_1, %c0_2] : memref<128x1152xbf16, #tpu.memory_space<vmem>>, vector<128x1152xbf16>
    %2 = arith.truncf %0 : vector<8x128xf32> to vector<8x128xbf16>
    %cst = arith.constant dense<0.000000e+00> : vector<8x1152xf32>
    %3 = tpu.matmul %2, %1, %cst {dimension_numbers = #tpu.dot_dimension_numbers<[1], [0], [0], [1], [0, 0, 1, 1], [], []>} : vector<8x128xbf16>, vector<128x1152xbf16>, vector<8x1152xf32> -> vector<8x1152xf32>
    %c0_3 = arith.constant 0 : index
    %c0_4 = arith.constant 0 : index
    %4 = vector.load %arg2[%c0_3, %c0_4] : memref<1x1152xf32, #tpu.memory_space<vmem>>, vector<1x1152xf32>
    %5 = vector.broadcast %4 : vector<1x1152xf32> to vector<8x1152xf32>
    %6 = arith.addf %3, %5 : vector<8x1152xf32>
    %c0_5 = arith.constant 0 : index
    %c0_6 = arith.constant 0 : index
    %7 = vector.load %arg3[%c0_5, %c0_6] : memref<8x1152xf32, #tpu.memory_space<vmem>>, vector<8x1152xf32>
    tpu.vector_store %arg3[%c0_5, %c0_6], %6 {strides = array<i32>} : memref<8x1152xf32, #tpu.memory_space<vmem>>, vector<8x1152xf32>,
    return
  }
}

</mosaic_0001>

<llo_original>
// kernel: tpu_custom_call.1
$region0: #{tpu_custom_call.1}
  #allocation0 [shape = 'u32[]', space=smem, size = 0x4, offset = 0x4, fixed_abs, tag = 'smem constant byte address 0x4 - core index']
  #allocation1 [shape = 'u32[144,128]{1,0:T(1,128)}', space=vmem, size = 0x12000, scoped, tag = 'internal scratch']
  %s0 = inlined_call_operand.hbm [shape: f32[8,128], index: 0, kind: input, shape index: {}]
  %s1 = inlined_call_operand.hbm [shape: bf16[128,1152], index: 1, kind: input, shape index: {}]
  %s2 = inlined_call_operand.hbm [shape: f32[1,1152], index: 2, kind: input, shape index: {}]
  %s3 = inlined_call_operand.hbm [shape: f32[8,1152], index: 3, kind: output, shape index: {}]
  %s4 = sld [smem:[#allocation0]]
  $region34: #{tpu_custom_call.1} parent=0
    _
  %s6 = ssub.s32 1, %s4
  %s7 = scalar_select 0, %s6, %s4
  $region1: #{tpu_custom_call.1} parent=0
    #allocation2 [shape = 'u8[4096]{0}', space=vmem, size = 0x1000, scoped, tag = 'input window, operand 0, single buffered']
    #allocation3 [shape = 's32[1]{0}', space=sflag, size = 0x4, scoped, tag = 'scoped memory for tpu_custom_call.1']
    #allocation4 [shape = 's32[1]{0}', space=sflag, size = 0x4, scoped, tag = 'scoped memory for tpu_custom_call.1']
    #allocation5 [shape = 'u8[294912]{0}', space=vmem, size = 0x48000, scoped, tag = 'input window, operand 1, single buffered']
    #allocation6 [shape = 's32[1]{0}', space=sflag, size = 0x4, scoped, tag = 'scoped memory for tpu_custom_call.1']
    #allocation7 [shape = 'u8[4608]{0}', space=vmem, size = 0x1400, scoped, tag = 'input window, operand 2, single buffered']
    #allocation8 [shape = 'u8[36864]{0}', space=vmem, size = 0x9000, scoped, tag = 'output window, operand 0, single buffered']
    %8 = vsyncpa [#allocation3], 0
    %9 = vsyncpa [#allocation6], 0
    %10 = vsyncpa [#allocation4], 0
    // Predicated region
    $region2: #{tpu_custom_call.1} parent=1 // pred_check
      _
    $region3: #{tpu_custom_call.1} parent=1 // pred_check_branch
      %12 = sbr.rel (0) target = $region5
    $region4: #{tpu_custom_call.1} parent=1 // pred_region
      %s14 = ssub.s32 128, 128
      %15 = vsyncadd [#allocation3], %s14
      %s17 = sshll.u32 [#allocation2], 4
      %s18 = int_to_ptr.vmem [resolvable:$true] %s17
      %20 = dma.hbm_to_vmem [thread:$0]  %s0, 128, %s18, [#allocation3]
    $region5: #{tpu_custom_call.1} parent=1 // pred_fallthru
      _
    // Predicated region
    $region6: #{tpu_custom_call.1} parent=1 // pred_check
      _
    $region7: #{tpu_custom_call.1} parent=1 // pred_check_branch
      %22 = sbr.rel (0) target = $region9
    $region8: #{tpu_custom_call.1} parent=1 // pred_region
      %s24 = ssub.s32 9216, 9216
      %25 = vsyncadd [#allocation6], %s24
      %s26 = sshll.u32 [#allocation5], 4
      %s27 = int_to_ptr.vmem [resolvable:$true] %s26
      %32 = dma.hbm_to_vmem [thread:$0]  %s1, 9216, %s27, [#allocation6], 576, 576, 36
    $region9: #{tpu_custom_call.1} parent=1 // pred_fallthru
      _
    // Predicated region
    $region10: #{tpu_custom_call.1} parent=1 // pred_check
      _
    $region11: #{tpu_custom_call.1} parent=1 // pred_check_branch
      %34 = sbr.rel (0) target = $region13
    $region12: #{tpu_custom_call.1} parent=1 // pred_region
      %s36 = ssub.s32 144, 144
      %37 = vsyncadd [#allocation6], %s36
      %s39 = sshll.u32 [#allocation7], 4
      %s40 = int_to_ptr.vmem [resolvable:$true] %s39
      %42 = dma.hbm_to_vmem [thread:$0]  %s2, 144, %s40, [#allocation6]
    $region13: #{tpu_custom_call.1} parent=1 // pred_fallthru
      _
    // Predicated region
    $region14: #{tpu_custom_call.1} parent=1 // pred_check
      _
    $region15: #{tpu_custom_call.1} parent=1 // pred_check_branch
      %44 = sbr.rel (0) target = $region17
    $region16: #{tpu_custom_call.1} parent=1 // pred_region
      %45 = dma.done [#allocation3], 128
    $region17: #{tpu_custom_call.1} parent=1 // pred_fallthru
      _
    // Predicated region
    $region18: #{tpu_custom_call.1} parent=1 // pred_check
      _
    $region19: #{tpu_custom_call.1} parent=1 // pred_check_branch
      %47 = sbr.rel (0) target = $region21
    $region20: #{tpu_custom_call.1} parent=1 // pred_region
      %48 = dma.done [#allocation6], 9216
    $region21: #{tpu_custom_call.1} parent=1 // pred_fallthru
      _
    // Predicated region
    $region22: #{tpu_custom_call.1} parent=1 // pred_check
      _
    $region23: #{tpu_custom_call.1} parent=1 // pred_check_branch
      %50 = sbr.rel (0) target = $region25
    $region24: #{tpu_custom_call.1} parent=1 // pred_region
      %51 = dma.done [#allocation6], 144
    $region25: #{tpu_custom_call.1} parent=1 // pred_fallthru
      _
    %v53 = vld [vmem:[#allocation2] sm:$0xff]
    %v54 = vld [vmem:[#allocation5] sm:$0xff]
    %v55 = vld [vmem:[#allocation5 + $0x8] sm:$0xff]
    %v56 = vld [vmem:[#allocation5 + $0x10] sm:$0xff]
    %v57 = vld [vmem:[#allocation5 + $0x18] sm:$0xff]
    %v58 = vld [vmem:[#allocation5 + $0x20] sm:$0xf]
    %v59 = vld [vmem:[#allocation5 + $0x24] sm:$0xff]
    %v60 = vld [vmem:[#allocation5 + $0x2c] sm:$0xff]
    %v61 = vld [vmem:[#allocation5 + $0x34] sm:$0xff]
    %v62 = vld [vmem:[#allocation5 + $0x3c] sm:$0xff]
    %v63 = vld [vmem:[#allocation5 + $0x44] sm:$0xf]
    %v64 = vld [vmem:[#allocation5 + $0x48] sm:$0xff]
    %v65 = vld [vmem:[#allocation5 + $0x50] sm:$0xff]
    %v66 = vld [vmem:[#allocation5 + $0x58] sm:$0xff]
    %v67 = vld [vmem:[#allocation5 + $0x60] sm:$0xff]
    %v68 = vld [vmem:[#allocation5 + $0x68] sm:$0xf]
    %v69 = vld [vmem:[#allocation5 + $0x6c] sm:$0xff]
    %v70 = vld [vmem:[#allocation5 + $0x74] sm:$0xff]
    %v71 = vld [vmem:[#allocation5 + $0x7c] sm:$0xff]
    %v72 = vld [vmem:[#allocation5 + $0x84] sm:$0xff]
    %v73 = vld [vmem:[#allocation5 + $0x8c] sm:$0xf]
    %v74 = vld [vmem:[#allocation5 + $0x90] sm:$0xff]
    %v75 = vld [vmem:[#allocation5 + $0x98] sm:$0xff]
    %v76 = vld [vmem:[#allocation5 + $0xa0] sm:$0xff]
    %v77 = vld [vmem:[#allocation5 + $0xa8] sm:$0xff]
    %v78 = vld [vmem:[#allocation5 + $0xb0] sm:$0xf]
    %v79 = vld [vmem:[#allocation5 + $0xb4] sm:$0xff]
    %v80 = vld [vmem:[#allocation5 + $0xbc] sm:$0xff]
    %v81 = vld [vmem:[#allocation5 + $0xc4] sm:$0xff]
    %v82 = vld [vmem:[#allocation5 + $0xcc] sm:$0xff]
    %v83 = vld [vmem:[#allocation5 + $0xd4] sm:$0xf]
    %v84 = vld [vmem:[#allocation5 + $0xd8] sm:$0xff]
    %v85 = vld [vmem:[#allocation5 + $0xe0] sm:$0xff]
    %v86 = vld [vmem:[#allocation5 + $0xe8] sm:$0xff]
    %v87 = vld [vmem:[#allocation5 + $0xf0] sm:$0xff]
    %v88 = vld [vmem:[#allocation5 + $0xf8] sm:$0xf]
    %v89 = vld [vmem:[#allocation5 + $0xfc] sm:$0xff]
    %v90 = vld [vmem:[#allocation5 + $0x104] sm:$0xff]
    %v91 = vld [vmem:[#allocation5 + $0x10c] sm:$0xff]
    %v92 = vld [vmem:[#allocation5 + $0x114] sm:$0xff]
    %v93 = vld [vmem:[#allocation5 + $0x11c] sm:$0xf]
    %v94 = vld [vmem:[#allocation5 + $0x120] sm:$0xff]
    %v95 = vld [vmem:[#allocation5 + $0x128] sm:$0xff]
    %v96 = vld [vmem:[#allocation5 + $0x130] sm:$0xff]
    %v97 = vld [vmem:[#allocation5 + $0x138] sm:$0xff]
    %v98 = vld [vmem:[#allocation5 + $0x140] sm:$0xf]
    %v99 = vld [vmem:[#allocation5 + $0x144] sm:$0xff]
    %v100 = vld [vmem:[#allocation5 + $0x14c] sm:$0xff]
    %v101 = vld [vmem:[#allocation5 + $0x154] sm:$0xff]
    %v102 = vld [vmem:[#allocation5 + $0x15c] sm:$0xff]
    %v103 = vld [vmem:[#allocation5 + $0x164] sm:$0xf]
    %v104 = vld [vmem:[#allocation5 + $0x168] sm:$0xff]
    %v105 = vld [vmem:[#allocation5 + $0x170] sm:$0xff]
    %v106 = vld [vmem:[#allocation5 + $0x178] sm:$0xff]
    %v107 = vld [vmem:[#allocation5 + $0x180] sm:$0xff]
    %v108 = vld [vmem:[#allocation5 + $0x188] sm:$0xf]
    %v109 = vld [vmem:[#allocation5 + $0x18c] sm:$0xff]
    %v110 = vld [vmem:[#allocation5 + $0x194] sm:$0xff]
    %v111 = vld [vmem:[#allocation5 + $0x19c] sm:$0xff]
    %v112 = vld [vmem:[#allocation5 + $0x1a4] sm:$0xff]
    %v113 = vld [vmem:[#allocation5 + $0x1ac] sm:$0xf]
    %v114 = vld [vmem:[#allocation5 + $0x1b0] sm:$0xff]
    %v115 = vld [vmem:[#allocation5 + $0x1b8] sm:$0xff]
    %v116 = vld [vmem:[#allocation5 + $0x1c0] sm:$0xff]
    %v117 = vld [vmem:[#allocation5 + $0x1c8] sm:$0xff]
    %v118 = vld [vmem:[#allocation5 + $0x1d0] sm:$0xf]
    %v119 = vld [vmem:[#allocation5 + $0x1d4] sm:$0xff]
    %v120 = vld [vmem:[#allocation5 + $0x1dc] sm:$0xff]
    %v121 = vld [vmem:[#allocation5 + $0x1e4] sm:$0xff]
    %v122 = vld [vmem:[#allocation5 + $0x1ec] sm:$0xff]
    %v123 = vld [vmem:[#allocation5 + $0x1f4] sm:$0xf]
    %v124 = vld [vmem:[#allocation5 + $0x1f8] sm:$0xff]
    %v125 = vld [vmem:[#allocation5 + $0x200] sm:$0xff]
    %v126 = vld [vmem:[#allocation5 + $0x208] sm:$0xff]
    %v127 = vld [vmem:[#allocation5 + $0x210] sm:$0xff]
    %v128 = vld [vmem:[#allocation5 + $0x218] sm:$0xf]
    %v129 = vld [vmem:[#allocation5 + $0x21c] sm:$0xff]
    %v130 = vld [vmem:[#allocation5 + $0x224] sm:$0xff]
    %v131 = vld [vmem:[#allocation5 + $0x22c] sm:$0xff]
    %v132 = vld [vmem:[#allocation5 + $0x234] sm:$0xff]
    %v133 = vld [vmem:[#allocation5 + $0x23c] sm:$0xf]
    %v134 = vpack.c.bf16 %v53, %v53
    %v135 = vld [vmem:[#allocation7] sm:$0xff]
    %v136 = vld [vmem:[#allocation7 + $0x8] sm:$0x1]
    %v139 = vlaneseq
    %v140 = vshrl.u32 %v139, 7
    %v141 = vsub.s32 0, %v140
    %v142 = vrot.slane %v135, %v141
    %v143 = vlaneseq
    %v144 = vshrl.u32 %v143, 7
    %v145 = vsub.s32 1, %v144
    %v146 = vrot.slane %v135, %v145
    %v147 = vlaneseq
    %v148 = vshrl.u32 %v147, 7
    %v149 = vsub.s32 2, %v148
    %v150 = vrot.slane %v135, %v149
    %v151 = vlaneseq
    %v152 = vshrl.u32 %v151, 7
    %v153 = vsub.s32 3, %v152
    %v154 = vrot.slane %v135, %v153
    %v155 = vlaneseq
    %v156 = vshrl.u32 %v155, 7
    %v157 = vsub.s32 4, %v156
    %v158 = vrot.slane %v135, %v157
    %v159 = vlaneseq
    %v160 = vshrl.u32 %v159, 7
    %v161 = vsub.s32 5, %v160
    %v162 = vrot.slane %v135, %v161
    %v163 = vlaneseq
    %v164 = vshrl.u32 %v163, 7
    %v165 = vsub.s32 6, %v164
    %v166 = vrot.slane %v135, %v165
    %v167 = vlaneseq
    %v168 = vshrl.u32 %v167, 7
    %v169 = vsub.s32 7, %v168
    %v170 = vrot.slane %v135, %v169
    %v171 = vlaneseq
    %v172 = vshrl.u32 %v171, 7
    %v173 = vsub.s32 0, %v172
    %v174 = vrot.slane %v136, %v173
    %v264 = vunpack.c.l.b16 %v54
    %v265 = vunpack.c.h.b16 %v54
    %v266 = vunpack.c.l.b16 %v55
    %v267 = vunpack.c.h.b16 %v55
    %v268 = vunpack.c.l.b16 %v56
    %v269 = vunpack.c.h.b16 %v56
    %v270 = vunpack.c.l.b16 %v57
    %v271 = vunpack.c.h.b16 %v57
    %v272 = vunpack.c.l.b16 %v58
    %v273 = vunpack.c.l.b16 %v59
    %v274 = vunpack.c.h.b16 %v59
    %v275 = vunpack.c.l.b16 %v60
    %v276 = vunpack.c.h.b16 %v60
    %v277 = vunpack.c.l.b16 %v61
    %v278 = vunpack.c.h.b16 %v61
    %v279 = vunpack.c.l.b16 %v62
    %v280 = vunpack.c.h.b16 %v62
    %v281 = vunpack.c.l.b16 %v63
    %v282 = vunpack.c.l.b16 %v64
    %v283 = vunpack.c.h.b16 %v64
    %v284 = vunpack.c.l.b16 %v65
    %v285 = vunpack.c.h.b16 %v65
    %v286 = vunpack.c.l.b16 %v66
    %v287 = vunpack.c.h.b16 %v66
    %v288 = vunpack.c.l.b16 %v67
    %v289 = vunpack.c.h.b16 %v67
    %v290 = vunpack.c.l.b16 %v68
    %v291 = vunpack.c.l.b16 %v69
    %v292 = vunpack.c.h.b16 %v69
    %v293 = vunpack.c.l.b16 %v70
    %v294 = vunpack.c.h.b16 %v70
    %v295 = vunpack.c.l.b16 %v71
    %v296 = vunpack.c.h.b16 %v71
    %v297 = vunpack.c.l.b16 %v72
    %v298 = vunpack.c.h.b16 %v72
    %v299 = vunpack.c.l.b16 %v73
    %v300 = vunpack.c.l.b16 %v74
    %v301 = vunpack.c.h.b16 %v74
    %v302 = vunpack.c.l.b16 %v75
    %v303 = vunpack.c.h.b16 %v75
    %v304 = vunpack.c.l.b16 %v76
    %v305 = vunpack.c.h.b16 %v76
    %v306 = vunpack.c.l.b16 %v77
    %v307 = vunpack.c.h.b16 %v77
    %v308 = vunpack.c.l.b16 %v78
    %v309 = vunpack.c.l.b16 %v79
    %v310 = vunpack.c.h.b16 %v79
    %v311 = vunpack.c.l.b16 %v80
    %v312 = vunpack.c.h.b16 %v80
    %v313 = vunpack.c.l.b16 %v81
    %v314 = vunpack.c.h.b16 %v81
    %v315 = vunpack.c.l.b16 %v82
    %v316 = vunpack.c.h.b16 %v82
    %v317 = vunpack.c.l.b16 %v83
    %v318 = vunpack.c.l.b16 %v84
    %v319 = vunpack.c.h.b16 %v84
    %v320 = vunpack.c.l.b16 %v85
    %v321 = vunpack.c.h.b16 %v85
    %v322 = vunpack.c.l.b16 %v86
    %v323 = vunpack.c.h.b16 %v86
    %v324 = vunpack.c.l.b16 %v87
    %v325 = vunpack.c.h.b16 %v87
    %v326 = vunpack.c.l.b16 %v88
    %v327 = vunpack.c.l.b16 %v89
    %v328 = vunpack.c.h.b16 %v89
    %v329 = vunpack.c.l.b16 %v90
    %v330 = vunpack.c.h.b16 %v90
    %v331 = vunpack.c.l.b16 %v91
    %v332 = vunpack.c.h.b16 %v91
    %v333 = vunpack.c.l.b16 %v92
    %v334 = vunpack.c.h.b16 %v92
    %v335 = vunpack.c.l.b16 %v93
    %v336 = vunpack.c.l.b16 %v94
    %v337 = vunpack.c.h.b16 %v94
    %v338 = vunpack.c.l.b16 %v95
    %v339 = vunpack.c.h.b16 %v95
    %v340 = vunpack.c.l.b16 %v96
    %v341 = vunpack.c.h.b16 %v96
    %v342 = vunpack.c.l.b16 %v97
    %v343 = vunpack.c.h.b16 %v97
    %v344 = vunpack.c.l.b16 %v98
    %v345 = vunpack.c.l.b16 %v99
    %v346 = vunpack.c.h.b16 %v99
    %v347 = vunpack.c.l.b16 %v100
    %v348 = vunpack.c.h.b16 %v100
    %v349 = vunpack.c.l.b16 %v101
    %v350 = vunpack.c.h.b16 %v101
    %v351 = vunpack.c.l.b16 %v102
    %v352 = vunpack.c.h.b16 %v102
    %v353 = vunpack.c.l.b16 %v103
    %v354 = vunpack.c.l.b16 %v104
    %v355 = vunpack.c.h.b16 %v104
    %v356 = vunpack.c.l.b16 %v105
    %v357 = vunpack.c.h.b16 %v105
    %v358 = vunpack.c.l.b16 %v106
    %v359 = vunpack.c.h.b16 %v106
    %v360 = vunpack.c.l.b16 %v107
    %v361 = vunpack.c.h.b16 %v107
    %v362 = vunpack.c.l.b16 %v108
    %v363 = vunpack.c.l.b16 %v109
    %v364 = vunpack.c.h.b16 %v109
    %v365 = vunpack.c.l.b16 %v110
    %v366 = vunpack.c.h.b16 %v110
    %v367 = vunpack.c.l.b16 %v111
    %v368 = vunpack.c.h.b16 %v111
    %v369 = vunpack.c.l.b16 %v112
    %v370 = vunpack.c.h.b16 %v112
    %v371 = vunpack.c.l.b16 %v113
    %v372 = vunpack.c.l.b16 %v114
    %v373 = vunpack.c.h.b16 %v114
    %v374 = vunpack.c.l.b16 %v115
    %v375 = vunpack.c.h.b16 %v115
    %v376 = vunpack.c.l.b16 %v116
    %v377 = vunpack.c.h.b16 %v116
    %v378 = vunpack.c.l.b16 %v117
    %v379 = vunpack.c.h.b16 %v117
    %v380 = vunpack.c.l.b16 %v118
    %v381 = vunpack.c.l.b16 %v119
    %v382 = vunpack.c.h.b16 %v119
    %v383 = vunpack.c.l.b16 %v120
    %v384 = vunpack.c.h.b16 %v120
    %v385 = vunpack.c.l.b16 %v121
    %v386 = vunpack.c.h.b16 %v121
    %v387 = vunpack.c.l.b16 %v122
    %v388 = vunpack.c.h.b16 %v122
    %v389 = vunpack.c.l.b16 %v123
    %v390 = vunpack.c.l.b16 %v124
    %v391 = vunpack.c.h.b16 %v124
    %v392 = vunpack.c.l.b16 %v125
    %v393 = vunpack.c.h.b16 %v125
    %v394 = vunpack.c.l.b16 %v126
    %v395 = vunpack.c.h.b16 %v126
    %v396 = vunpack.c.l.b16 %v127
    %v397 = vunpack.c.h.b16 %v127
    %v398 = vunpack.c.l.b16 %v128
    %v399 = vunpack.c.l.b16 %v129
    %v400 = vunpack.c.h.b16 %v129
    %v401 = vunpack.c.l.b16 %v130
    %v402 = vunpack.c.h.b16 %v130
    %v403 = vunpack.c.l.b16 %v131
    %v404 = vunpack.c.h.b16 %v131
    %v405 = vunpack.c.l.b16 %v132
    %v406 = vunpack.c.h.b16 %v132
    %v407 = vunpack.c.l.b16 %v133
    %v408 = vpack.c.b16 %v273, %v264
    %v409 = vpack.c.b16 %v274, %v265
    %v410 = vpack.c.b16 %v275, %v266
    %v411 = vpack.c.b16 %v276, %v267
    %v412 = vpack.c.b16 %v277, %v268
    %v413 = vpack.c.b16 %v278, %v269
    %v414 = vpack.c.b16 %v279, %v270
    %v415 = vpack.c.b16 %v280, %v271
    %v416 = vpack.c.b16 %v281, %v272
    %v417 = vpack.c.b16 %v291, %v282
    %v418 = vpack.c.b16 %v292, %v283
    %v419 = vpack.c.b16 %v293, %v284
    %v420 = vpack.c.b16 %v294, %v285
    %v421 = vpack.c.b16 %v295, %v286
    %v422 = vpack.c.b16 %v296, %v287
    %v423 = vpack.c.b16 %v297, %v288
    %v424 = vpack.c.b16 %v298, %v289
    %v425 = vpack.c.b16 %v299, %v290
    %v426 = vpack.c.b16 %v309, %v300
    %v427 = vpack.c.b16 %v310, %v301
    %v428 = vpack.c.b16 %v311, %v302
    %v429 = vpack.c.b16 %v312, %v303
    %v430 = vpack.c.b16 %v313, %v304
    %v431 = vpack.c.b16 %v314, %v305
    %v432 = vpack.c.b16 %v315, %v306
    %v433 = vpack.c.b16 %v316, %v307
    %v434 = vpack.c.b16 %v317, %v308
    %v435 = vpack.c.b16 %v327, %v318
    %v436 = vpack.c.b16 %v328, %v319
    %v437 = vpack.c.b16 %v329, %v320
    %v438 = vpack.c.b16 %v330, %v321
    %v439 = vpack.c.b16 %v331, %v322
    %v440 = vpack.c.b16 %v332, %v323
    %v441 = vpack.c.b16 %v333, %v324
    %v442 = vpack.c.b16 %v334, %v325
    %v443 = vpack.c.b16 %v335, %v326
    %v444 = vpack.c.b16 %v345, %v336
    %v445 = vpack.c.b16 %v346, %v337
    %v446 = vpack.c.b16 %v347, %v338
    %v447 = vpack.c.b16 %v348, %v339
    %v448 = vpack.c.b16 %v349, %v340
    %v449 = vpack.c.b16 %v350, %v341
    %v450 = vpack.c.b16 %v351, %v342
    %v451 = vpack.c.b16 %v352, %v343
    %v452 = vpack.c.b16 %v353, %v344
    %v453 = vpack.c.b16 %v363, %v354
    %v454 = vpack.c.b16 %v364, %v355
    %v455 = vpack.c.b16 %v365, %v356
    %v456 = vpack.c.b16 %v366, %v357
    %v457 = vpack.c.b16 %v367, %v358
    %v458 = vpack.c.b16 %v368, %v359
    %v459 = vpack.c.b16 %v369, %v360
    %v460 = vpack.c.b16 %v370, %v361
    %v461 = vpack.c.b16 %v371, %v362
    %v462 = vpack.c.b16 %v381, %v372
    %v463 = vpack.c.b16 %v382, %v373
    %v464 = vpack.c.b16 %v383, %v374
    %v465 = vpack.c.b16 %v384, %v375
    %v466 = vpack.c.b16 %v385, %v376
    %v467 = vpack.c.b16 %v386, %v377
    %v468 = vpack.c.b16 %v387, %v378
    %v469 = vpack.c.b16 %v388, %v379
    %v470 = vpack.c.b16 %v389, %v380
    %v471 = vpack.c.b16 %v399, %v390
    %v472 = vpack.c.b16 %v400, %v391
    %v473 = vpack.c.b16 %v401, %v392
    %v474 = vpack.c.b16 %v402, %v393
    %v475 = vpack.c.b16 %v403, %v394
    %v476 = vpack.c.b16 %v404, %v395
    %v477 = vpack.c.b16 %v405, %v396
    %v478 = vpack.c.b16 %v406, %v397
    %v479 = vpack.c.b16 %v407, %v398
    %552 = vmatprep.subr.bf16.mxu0 %v409
    %553 = vmatpush1.bf16.msra.mxu0 %v408
    %554 = vmatprep.subr.bf16.mxu0 %v418
    %555 = vmatpush1.bf16.msra.mxu0 %v417
    %556 = vmatprep.subr.bf16.mxu0 %v427
    %557 = vmatpush1.bf16.msra.mxu0 %v426
    %558 = vmatprep.subr.bf16.mxu0 %v436
    %559 = vmatpush1.bf16.msra.mxu0 %v435
    %560 = vmatprep.subr.bf16.mxu0 %v445
    %561 = vmatpush1.bf16.msra.mxu0 %v444
    %562 = vmatprep.subr.bf16.mxu0 %v454
    %563 = vmatpush1.bf16.msra.mxu0 %v453
    %564 = vmatprep.subr.bf16.mxu0 %v463
    %565 = vmatpush1.bf16.msra.mxu0 %v462
    %566 = vmatprep.subr.bf16.mxu0 %v472
    %567 = vmatpush1.bf16.msra.mxu0 %v471
    %568 = vmatprep.subr.bf16.mxu0 0
    %569 = vmatpush1.bf16.msra.mxu0 0
    %570 = vmatprep.subr.bf16.mxu0 0
    %571 = vmatpush1.bf16.msra.mxu0 0
    %572 = vmatprep.subr.bf16.mxu0 0
    %573 = vmatpush1.bf16.msra.mxu0 0
    %574 = vmatprep.subr.bf16.mxu0 0
    %575 = vmatpush1.bf16.msra.mxu0 0
    %576 = vmatprep.subr.bf16.mxu0 0
    %577 = vmatpush1.bf16.msra.mxu0 0
    %578 = vmatprep.subr.bf16.mxu0 0
    %579 = vmatpush1.bf16.msra.mxu0 0
    %580 = vmatprep.subr.bf16.mxu0 0
    %581 = vmatpush1.bf16.msra.mxu0 0
    %582 = vmatprep.subr.bf16.mxu0 0
    %583 = vmatpush1.bf16.msra.mxu0 0
    %584 = vmatprep.mubr.bf16.mxu0 0
    %585 = vmatmul.mubr.bf16.gmra.mrb[0].mxu0 %v134
    %v586 = vpop.f32.mrb[0].mxu0
    %v587 = vadd.f32 %v142, %v586
    %v588 = vpop.f32.mrb[0].mxu0
    %v589 = vadd.f32 %v146, %v588
    %v590 = vpop.f32.mrb[0].mxu0
    %v591 = vpop.f32.mrb[0].mxu0
    %592 = vdwg.mxu0
    %593 = vmatprep.subr.bf16.mxu0 %v411
    %594 = vmatpush1.bf16.msra.mxu0 %v410
    %595 = vmatprep.subr.bf16.mxu0 %v420
    %596 = vmatpush1.bf16.msra.mxu0 %v419
    %597 = vmatprep.subr.bf16.mxu0 %v429
    %598 = vmatpush1.bf16.msra.mxu0 %v428
    %599 = vmatprep.subr.bf16.mxu0 %v438
    %600 = vmatpush1.bf16.msra.mxu0 %v437
    %601 = vmatprep.subr.bf16.mxu0 %v447
    %602 = vmatpush1.bf16.msra.mxu0 %v446
    %603 = vmatprep.subr.bf16.mxu0 %v456
    %604 = vmatpush1.bf16.msra.mxu0 %v455
    %605 = vmatprep.subr.bf16.mxu0 %v465
    %606 = vmatpush1.bf16.msra.mxu0 %v464
    %607 = vmatprep.subr.bf16.mxu0 %v474
    %608 = vmatpush1.bf16.msra.mxu0 %v473
    %609 = vmatprep.subr.bf16.mxu0 0
    %610 = vmatpush1.bf16.msra.mxu0 0
    %611 = vmatprep.subr.bf16.mxu0 0
    %612 = vmatpush1.bf16.msra.mxu0 0
    %613 = vmatprep.subr.bf16.mxu0 0
    %614 = vmatpush1.bf16.msra.mxu0 0
    %615 = vmatprep.subr.bf16.mxu0 0
    %616 = vmatpush1.bf16.msra.mxu0 0
    %617 = vmatprep.subr.bf16.mxu0 0
    %618 = vmatpush1.bf16.msra.mxu0 0
    %619 = vmatprep.subr.bf16.mxu0 0
    %620 = vmatpush1.bf16.msra.mxu0 0
    %621 = vmatprep.subr.bf16.mxu0 0
    %622 = vmatpush1.bf16.msra.mxu0 0
    %623 = vmatprep.subr.bf16.mxu0 0
    %624 = vmatpush1.bf16.msra.mxu0 0
    %625 = vmatprep.mubr.bf16.mxu0 0
    %626 = vmatmul.mubr.bf16.gmra.mrb[0].mxu0 %v134
    %v627 = vpop.f32.mrb[0].mxu0
    %v628 = vadd.f32 %v150, %v627
    %v629 = vpop.f32.mrb[0].mxu0
    %v630 = vadd.f32 %v154, %v629
    %v631 = vpop.f32.mrb[0].mxu0
    %v632 = vpop.f32.mrb[0].mxu0
    %633 = vdwg.mxu0
    %634 = vmatprep.subr.bf16.mxu0 %v413
    %635 = vmatpush1.bf16.msra.mxu0 %v412
    %636 = vmatprep.subr.bf16.mxu0 %v422
    %637 = vmatpush1.bf16.msra.mxu0 %v421
    %638 = vmatprep.subr.bf16.mxu0 %v431
    %639 = vmatpush1.bf16.msra.mxu0 %v430
    %640 = vmatprep.subr.bf16.mxu0 %v440
    %641 = vmatpush1.bf16.msra.mxu0 %v439
    %642 = vmatprep.subr.bf16.mxu0 %v449
    %643 = vmatpush1.bf16.msra.mxu0 %v448
    %644 = vmatprep.subr.bf16.mxu0 %v458
    %645 = vmatpush1.bf16.msra.mxu0 %v457
    %646 = vmatprep.subr.bf16.mxu0 %v467
    %647 = vmatpush1.bf16.msra.mxu0 %v466
    %648 = vmatprep.subr.bf16.mxu0 %v476
    %649 = vmatpush1.bf16.msra.mxu0 %v475
    %650 = vmatprep.subr.bf16.mxu0 0
    %651 = vmatpush1.bf16.msra.mxu0 0
    %652 = vmatprep.subr.bf16.mxu0 0
    %653 = vmatpush1.bf16.msra.mxu0 0
    %654 = vmatprep.subr.bf16.mxu0 0
    %655 = vmatpush1.bf16.msra.mxu0 0
    %656 = vmatprep.subr.bf16.mxu0 0
    %657 = vmatpush1.bf16.msra.mxu0 0
    %658 = vmatprep.subr.bf16.mxu0 0
    %659 = vmatpush1.bf16.msra.mxu0 0
    %660 = vmatprep.subr.bf16.mxu0 0
    %661 = vmatpush1.bf16.msra.mxu0 0
    %662 = vmatprep.subr.bf16.mxu0 0
    %663 = vmatpush1.bf16.msra.mxu0 0
    %664 = vmatprep.subr.bf16.mxu0 0
    %665 = vmatpush1.bf16.msra.mxu0 0
    %666 = vmatprep.mubr.bf16.mxu0 0
    %667 = vmatmul.mubr.bf16.gmra.mrb[0].mxu0 %v134
    %v668 = vpop.f32.mrb[0].mxu0
    %v669 = vadd.f32 %v158, %v668
    %v670 = vpop.f32.mrb[0].mxu0
    %v671 = vadd.f32 %v162, %v670
    %v672 = vpop.f32.mrb[0].mxu0
    %v673 = vpop.f32.mrb[0].mxu0
    %674 = vdwg.mxu0
    %675 = vmatprep.subr.bf16.mxu0 %v415
    %676 = vmatpush1.bf16.msra.mxu0 %v414
    %677 = vmatprep.subr.bf16.mxu0 %v424
    %678 = vmatpush1.bf16.msra.mxu0 %v423
    %679 = vmatprep.subr.bf16.mxu0 %v433
    %680 = vmatpush1.bf16.msra.mxu0 %v432
    %681 = vmatprep.subr.bf16.mxu0 %v442
    %682 = vmatpush1.bf16.msra.mxu0 %v441
    %683 = vmatprep.subr.bf16.mxu0 %v451
    %684 = vmatpush1.bf16.msra.mxu0 %v450
    %685 = vmatprep.subr.bf16.mxu0 %v460
    %686 = vmatpush1.bf16.msra.mxu0 %v459
    %687 = vmatprep.subr.bf16.mxu0 %v469
    %688 = vmatpush1.bf16.msra.mxu0 %v468
    %689 = vmatprep.subr.bf16.mxu0 %v478
    %690 = vmatpush1.bf16.msra.mxu0 %v477
    %691 = vmatprep.subr.bf16.mxu0 0
    %692 = vmatpush1.bf16.msra.mxu0 0
    %693 = vmatprep.subr.bf16.mxu0 0
    %694 = vmatpush1.bf16.msra.mxu0 0
    %695 = vmatprep.subr.bf16.mxu0 0
    %696 = vmatpush1.bf16.msra.mxu0 0
    %697 = vmatprep.subr.bf16.mxu0 0
    %698 = vmatpush1.bf16.msra.mxu0 0
    %699 = vmatprep.subr.bf16.mxu0 0
    %700 = vmatpush1.bf16.msra.mxu0 0
    %701 = vmatprep.subr.bf16.mxu0 0
    %702 = vmatpush1.bf16.msra.mxu0 0
    %703 = vmatprep.subr.bf16.mxu0 0
    %704 = vmatpush1.bf16.msra.mxu0 0
    %705 = vmatprep.subr.bf16.mxu0 0
    %706 = vmatpush1.bf16.msra.mxu0 0
    %707 = vmatprep.mubr.bf16.mxu0 0
    %708 = vmatmul.mubr.bf16.gmra.mrb[0].mxu0 %v134
    %v709 = vpop.f32.mrb[0].mxu0
    %v710 = vadd.f32 %v166, %v709
    %v711 = vpop.f32.mrb[0].mxu0
    %v712 = vadd.f32 %v170, %v711
    %v713 = vpop.f32.mrb[0].mxu0
    %v714 = vpop.f32.mrb[0].mxu0
    %715 = vdwg.mxu0
    %716 = vmatprep.subr.bf16.mxu0 0
    %717 = vmatpush1.bf16.msra.mxu0 %v416
    %718 = vmatprep.subr.bf16.mxu0 0
    %719 = vmatpush1.bf16.msra.mxu0 %v425
    %720 = vmatprep.subr.bf16.mxu0 0
    %721 = vmatpush1.bf16.msra.mxu0 %v434
    %722 = vmatprep.subr.bf16.mxu0 0
    %723 = vmatpush1.bf16.msra.mxu0 %v443
    %724 = vmatprep.subr.bf16.mxu0 0
    %725 = vmatpush1.bf16.msra.mxu0 %v452
    %726 = vmatprep.subr.bf16.mxu0 0
    %727 = vmatpush1.bf16.msra.mxu0 %v461
    %728 = vmatprep.subr.bf16.mxu0 0
    %729 = vmatpush1.bf16.msra.mxu0 %v470
    %730 = vmatprep.subr.bf16.mxu0 0
    %731 = vmatpush1.bf16.msra.mxu0 %v479
    %732 = vmatprep.subr.bf16.mxu0 0
    %733 = vmatpush1.bf16.msra.mxu0 0
    %734 = vmatprep.subr.bf16.mxu0 0
    %735 = vmatpush1.bf16.msra.mxu0 0
    %736 = vmatprep.subr.bf16.mxu0 0
    %737 = vmatpush1.bf16.msra.mxu0 0
    %738 = vmatprep.subr.bf16.mxu0 0
    %739 = vmatpush1.bf16.msra.mxu0 0
    %740 = vmatprep.subr.bf16.mxu0 0
    %741 = vmatpush1.bf16.msra.mxu0 0
    %742 = vmatprep.subr.bf16.mxu0 0
    %743 = vmatpush1.bf16.msra.mxu0 0
    %744 = vmatprep.subr.bf16.mxu0 0
    %745 = vmatpush1.bf16.msra.mxu0 0
    %746 = vmatprep.subr.bf16.mxu0 0
    %747 = vmatpush1.bf16.msra.mxu0 0
    %748 = vmatprep.mubr.bf16.mxu0 0
    %749 = vmatmul.mubr.bf16.gmra.mrb[0].mxu0 %v134
    %v750 = vpop.f32.mrb[0].mxu0
    %v751 = vadd.f32 %v174, %v750
    %v752 = vpop.f32.mrb[0].mxu0
    %v753 = vpop.f32.mrb[0].mxu0
    %v754 = vpop.f32.mrb[0].mxu0
    %755 = vdwg.mxu0
    %756 = vst [vmem:[#allocation8] sm:$0xff] %v587
    %757 = vst [vmem:[#allocation8 + $0x8] sm:$0xff] %v589
    %758 = vst [vmem:[#allocation8 + $0x10] sm:$0xff] %v628
    %759 = vst [vmem:[#allocation8 + $0x18] sm:$0xff] %v630
    %760 = vst [vmem:[#allocation8 + $0x20] sm:$0xff] %v669
    %761 = vst [vmem:[#allocation8 + $0x28] sm:$0xff] %v671
    %762 = vst [vmem:[#allocation8 + $0x30] sm:$0xff] %v710
    %763 = vst [vmem:[#allocation8 + $0x38] sm:$0xff] %v712
    %764 = vst [vmem:[#allocation8 + $0x40] sm:$0xff] %v751
    // Predicated region
    $region26: #{tpu_custom_call.1} parent=1 // pred_check
      _
    $region27: #{tpu_custom_call.1} parent=1 // pred_check_branch
      %766 = sbr.rel (0) target = $region29
    $region28: #{tpu_custom_call.1} parent=1 // pred_region
      %s768 = ssub.s32 1152, 1152
      %769 = vsyncadd [#allocation4], %s768
      %s771 = sshll.u32 [#allocation8], 4
      %s772 = int_to_ptr.vmem [resolvable:$true] %s771
      %774 = dma.vmem_to_hbm [thread:$0]  %s772, 1152, %s3, [#allocation4]
    $region29: #{tpu_custom_call.1} parent=1 // pred_fallthru
      _
    // Predicated region
    $region30: #{tpu_custom_call.1} parent=1 // pred_check
      _
    $region31: #{tpu_custom_call.1} parent=1 // pred_check_branch
      %776 = sbr.rel (0) target = $region33
    $region32: #{tpu_custom_call.1} parent=1 // pred_region
      %777 = dma.done [#allocation4], 1152
    $region33: #{tpu_custom_call.1} parent=1 // pred_fallthru
      _
    %778 = vsyncpa [#allocation3], 1
    %779 = vsyncpa [#allocation6], 1
    %780 = vsyncpa [#allocation4], 1

</llo_original>
